<compile_context>
chip_gen: v7x
topology: tpu7x:2x2x1
jax: 0.10.0
libtpu: 0.0.40
codegen_flags: <defaults>
</compile_context>

<pallas_src>
import math
import functools

import jax
import jax.numpy as jnp
from jax import lax
from jax.experimental import pallas as pl
from jax.experimental.pallas import tpu as pltpu


def _round_up(x, m):
    return ((x + m - 1) // m) * m


def _cdiv(a, b):
    return (a + b - 1) // b


def _pick_tk(d_mlp, tk_max):
    """Reduction tile over d_mlp: full dim if it fits, else a 128-multiple.
    Prefers an exact divisor of d_mlp (no padding) when it is not tiny."""
    if d_mlp <= tk_max:
        return d_mlp
    tk_cap = max(128, (tk_max // 128) * 128)
    for cand in range(tk_cap, 127, -128):
        if d_mlp % cand == 0:
            if 2 * cand >= tk_cap:
                return cand
            break
    return tk_cap


def _vmem_footprint(tm, tk, d_model, x_bytes, w_bytes, b_bytes, out_bytes):
    """Approximate per-step VMEM use with default double-buffering."""
    return (2 * tm * d_model * x_bytes            # x row tile
            + 2 * d_model * tk * w_bytes          # W1 chunk
            + 2 * tk * d_model * w_bytes          # W2 chunk
            + 2 * (tk + d_model) * b_bytes        # bias chunks
            + 2 * tm * d_model * out_bytes        # output tile
            + tm * d_model * 4                    # f32 accumulator scratch
            + 2 * tm * tk * 4)                    # h intermediate headroom (f32)


def _plan_tiles(M, d_model, d_mlp, tm_max, tk_max,
                x_bytes, w_bytes, b_bytes, out_bytes, budget):
    """Pick (grid_i, tm_eff, M_pad, tk_eff, K_pad) that fit the VMEM budget."""
    M8 = _round_up(M, 8)
    tm_max = max(8, (tm_max // 8) * 8)

    # Row-tile count: >=2 when the input is big enough to feed both TCs.
    if M8 <= tm_max:
        grid_i = 2 if M8 >= 256 else 1
    else:
        grid_i = _cdiv(M8, tm_max)

    tk_eff = _pick_tk(d_mlp, tk_max)

    while True:
        tm_eff = _round_up(_cdiv(M8, grid_i), 8)
        fp = _vmem_footprint(tm_eff, tk_eff, d_model,
                             x_bytes, w_bytes, b_bytes, out_bytes)
        if fp <= budget:
            break
        if tk_eff > 256:
            new_tk = _pick_tk(d_mlp, max(256, tk_eff // 2))
            if new_tk < tk_eff:
                tk_eff = new_tk
                continue
        if tm_eff > 128:
            grid_i += 1
            continue
        break  # smallest sensible tiles; accept and move on

    M_pad = grid_i * tm_eff
    K_pad = _round_up(d_mlp, tk_eff)
    return grid_i, tm_eff, M_pad, tk_eff, K_pad


def _mlp_kernel(x_ref, w1_ref, b1_ref, w2_ref, b2_ref, o_ref, *scratch,
                nk, gelu_approx):
    """One (tm, tk) chunk of: (x @ W1 + b1) -> GELU -> @ W2 ; +b2 at the end."""
    # First linear: native-dtype operands into the MXU, f32 accumulation.
    h = jnp.dot(x_ref[...], w1_ref[...], preferred_element_type=jnp.float32)
    h = h + b1_ref[...].astype(jnp.float32)

    if gelu_approx:
        # tanh approximation: moves elementwise work onto the EUP slot.
        c = math.sqrt(2.0 / math.pi)
        h = 0.5 * h * (1.0 + jnp.tanh(c * (h + 0.044715 * h * h * h)))
    else:
        # Exact erf-based GELU in f32 (matches torch.nn.functional.gelu default).
        h = 0.5 * h * (1.0 + lax.erf(h * (1.0 / math.sqrt(2.0))))

    # Second linear: this d_mlp chunk's partial contribution.
    partial = jnp.dot(h.astype(w2_ref.dtype), w2_ref[...],
                      preferred_element_type=jnp.float32)

    if nk == 1:
        # Single reduction step: skip the scratch accumulator entirely.
        o_ref[...] = (partial + b2_ref[...].astype(jnp.float32)).astype(o_ref.dtype)
        return

    acc_ref = scratch[0]
    k = pl.program_id(1)

    @pl.when(k == 0)
    def _():
        acc_ref[...] = partial                      # direct write (no zero-init + add)

    @pl.when(jnp.logical_and(k > 0, k < nk - 1))
    def _():
        acc_ref[...] += partial

    @pl.when(k == nk - 1)
    def _():
        # Fold the fresh partial, b2 and the output cast into the final store.
        o_ref[...] = (acc_ref[...] + partial
                      + b2_ref[...].astype(jnp.float32)).astype(o_ref.dtype)


@functools.partial(jax.jit, static_argnames=("tm", "tk", "compute_dtype", "gelu_approx"))
def mlp_pallas(resid, w1, b1, w2, b2, *, tm=512, tk=1024,
               compute_dtype=None, gelu_approx=False):
    """resid: [B, S, d_model]; w1: [d_model, d_mlp]; w2: [d_mlp, d_model].

    Weights are stored pre-transposed ([in, out]) so the kernel computes
    x @ W + b, matching PyTorch's nn.Linear (y = x @ W.T + b).
    `compute_dtype=jnp.bfloat16` feeds bf16 operands to the MXU (f32 accum kept).
    """
    B, S, d_model = resid.shape
    d_mlp = w1.shape[1]
    M = B * S
    out_dtype = resid.dtype

    x2d = resid.reshape(M, d_model)
    if compute_dtype is not None:
        x2d = x2d.astype(compute_dtype)
        w1 = w1.astype(compute_dtype)
        w2 = w2.astype(compute_dtype)

    x_bytes = x2d.dtype.itemsize
    w_bytes = w1.dtype.itemsize
    b_bytes = b1.dtype.itemsize
    o_bytes = out_dtype.itemsize

    # VMEM limit derived from hardware (v7x: ~48 MiB of 64; v6e/v5e: ~96 of 128).
    try:
        vmem_cap = int(getattr(pltpu.get_tpu_info(), "vmem_capacity_bytes", 0)) or (64 << 20)
    except Exception:
        vmem_cap = 64 << 20
    vmem_limit = min(int(0.75 * vmem_cap), 100 << 20)
    budget = int(0.85 * vmem_limit)

    grid_i, tm_eff, M_pad, tk_eff, K_pad = _plan_tiles(
        M, d_model, d_mlp, tm, tk, x_bytes, w_bytes, b_bytes, o_bytes, budget)
    nk = K_pad // tk_eff

    if M_pad != M:
        x2d = jnp.pad(x2d, ((0, M_pad - M), (0, 0)))

    # Zero-pad the hidden dim if tk does not divide it (numerically exact:
    # padded b1 entries are 0 -> GELU(0)=0, and padded W2 rows are 0).
    w1p, b1p, w2p = w1, b1, w2
    if K_pad != d_mlp:
        kp = K_pad - d_mlp
        w1p = jnp.pad(w1, ((0, 0), (0, kp)))
        b1p = jnp.pad(b1, ((0, kp),))
        w2p = jnp.pad(w2, ((0, kp), (0, 0)))

    b1_2d = b1p.reshape(1, K_pad)
    b2_2d = b2.reshape(1, d_model)

    grid = (grid_i, nk)
    kernel = functools.partial(_mlp_kernel, nk=nk, gelu_approx=gelu_approx)
    scratch = [] if nk == 1 else [pltpu.VMEM((tm_eff, d_model), jnp.float32)]

    cost = pl.CostEstimate(
        flops=4 * M_pad * d_model * K_pad,                 # two matmuls
        transcendentals=M_pad * K_pad,                     # erf/tanh in GELU
        bytes_accessed=(
            x2d.size * x_bytes                             # activations (read once)
            + grid_i * (w1p.size * w_bytes + w2p.size * w_bytes
                        + b1_2d.size * b_bytes)            # weights re-streamed per row tile
            + b2_2d.size * b_bytes
            + M_pad * d_model * o_bytes),                  # output write
    )

    out2d = pl.pallas_call(
        kernel,
        out_shape=jax.ShapeDtypeStruct((M_pad, d_model), out_dtype),
        grid_spec=pltpu.PrefetchScalarGridSpec(
            num_scalar_prefetch=0,
            grid=grid,
            in_specs=[
                pl.BlockSpec((tm_eff, d_model), lambda i, k: (i, 0)),   # x row tile
                pl.BlockSpec((d_model, tk_eff), lambda i, k: (0, k)),   # W1 chunk
                pl.BlockSpec((1, tk_eff), lambda i, k: (0, k)),         # b1 chunk
                pl.BlockSpec((tk_eff, d_model), lambda i, k: (k, 0)),   # W2 chunk
                pl.BlockSpec((1, d_model), lambda i, k: (0, 0)),        # b2 (const)
            ],
            out_specs=pl.BlockSpec((tm_eff, d_model), lambda i, k: (i, 0)),
            scratch_shapes=scratch,
        ),
        compiler_params=pltpu.CompilerParams(
            dimension_semantics=("parallel", "arbitrary"),
            vmem_limit_bytes=vmem_limit,
        ),
        cost_estimate=cost,
    )(x2d, w1p, b1_2d, w2p, b2_2d)

    if M_pad != M:
        out2d = out2d[:M]
    return out2d.reshape(B, S, d_model)


def init_params(key, d_model, d_mlp, init_std_dev=0.02, dtype=jnp.float32):
    """Deterministic init mirroring the PyTorch module: weights ~ N(0, std);
    biases use nn.Linear's default uniform(-1/sqrt(fan_in), 1/sqrt(fan_in))."""
    k1, k2, k3, k4 = jax.random.split(key, 4)
    # Stored pre-transposed: [in, out].
    w1 = (init_std_dev * jax.random.normal(k1, (d_model, d_mlp))).astype(dtype)
    w2 = (init_std_dev * jax.random.normal(k2, (d_mlp, d_model))).astype(dtype)
    bound1 = 1.0 / math.sqrt(d_model)
    bound2 = 1.0 / math.sqrt(d_mlp)
    b1 = jax.random.uniform(k3, (d_mlp,), minval=-bound1, maxval=bound1).astype(dtype)
    b2 = jax.random.uniform(k4, (d_model,), minval=-bound2, maxval=bound2).astype(dtype)
    return w1, b1, w2, b2


def mlp_reference(resid, w1, b1, w2, b2):
    h = resid @ w1 + b1
    h = 0.5 * h * (1.0 + lax.erf(h / math.sqrt(2.0)))
    return h @ w2 + b2


if __name__ == "__main__":
    # Primary check: small shapes, single reduction step.
    batch, seq, d_model, d_mlp = 2, 8, 32, 128
    key = jax.random.PRNGKey(0)
    k_x, k_p = jax.random.split(key)
    resid = jax.random.normal(k_x, (batch, seq, d_model), dtype=jnp.float32)
    w1, b1, w2, b2 = init_params(k_p, d_model, d_mlp, init_std_dev=0.02)

    out = mlp_pallas(resid, w1, b1, w2, b2)
    jax.block_until_ready(out)
    ref = mlp_reference(resid, w1, b1, w2, b2)
    assert out.shape == (batch, seq, d_model)
    assert jnp.allclose(out, ref, atol=1e-5, rtol=1e-5), "mismatch (single-k path)"

    # Secondary check: exercises multi-step reduction, row padding and
    # hidden-dim zero-padding (d_mlp=320 with tk=256 -> K_pad=512, nk=2).
    batch2, seq2, d_model2, d_mlp2 = 3, 8, 64, 320
    k_x2, k_p2 = jax.random.split(jax.random.PRNGKey(1))
    resid2 = jax.random.normal(k_x2, (batch2, seq2, d_model2), dtype=jnp.float32)
    w1b, b1b, w2b, b2b = init_params(k_p2, d_model2, d_mlp2, init_std_dev=0.02)
    out2 = mlp_pallas(resid2, w1b, b1b, w2b, b2b, tm=16, tk=256)
    jax.block_until_ready(out2)
    ref2 = mlp_reference(resid2, w1b, b1b, w2b, b2b)
    assert out2.shape == (batch2, seq2, d_model2)
    assert jnp.allclose(out2, ref2, atol=2e-5, rtol=1e-4), "mismatch (multi-k path)"

    print("KERNEL_OK")
</pallas_src>

<mosaic_0001>
module attributes {stable_mosaic.version = 11 : i64} {
  func.func @_mlp_kernel(%arg0: i32, %arg1: i32, %arg2: memref<16x32xf32, #tpu.memory_space<vmem>>, %arg3: memref<32x128xf32, #tpu.memory_space<vmem>>, %arg4: memref<1x128xf32, #tpu.memory_space<vmem>>, %arg5: memref<128x32xf32, #tpu.memory_space<vmem>>, %arg6: memref<1x32xf32, #tpu.memory_space<vmem>>, %arg7: memref<16x32xf32, #tpu.memory_space<vmem>>) attributes {dimension_semantics = [#tpu.dimension_semantics<parallel>, #tpu.dimension_semantics<arbitrary>], iteration_bounds = array<i64: 1, 1>, scalar_prefetch = 0 : i64, scratch_operands = 0 : i64, tpu.core_type = #tpu.core_type<tc>, window_params = [{transform_indices = @transform_0, window_bounds = array<i64: 16, 32>}, {transform_indices = @transform_1, window_bounds = array<i64: 32, 128>}, {transform_indices = @transform_2, window_bounds = array<i64: 1, 128>}, {transform_indices = @transform_3, window_bounds = array<i64: 128, 32>}, {pipeline_mode = #tpu.pipeline_mode<synchronous>, transform_indices = @transform_4, window_bounds = array<i64: 1, 32>}, {transform_indices = @transform_5, window_bounds = array<i64: 16, 32>}]} {
    %c0 = arith.constant 0 : index
    %c0_0 = arith.constant 0 : index
    %0 = vector.load %arg2[%c0, %c0_0] : memref<16x32xf32, #tpu.memory_space<vmem>>, vector<16x32xf32>
    %c0_1 = arith.constant 0 : index
    %c0_2 = arith.constant 0 : index
    %1 = vector.load %arg3[%c0_1, %c0_2] : memref<32x128xf32, #tpu.memory_space<vmem>>, vector<32x128xf32>
    %cst = arith.constant dense<0.000000e+00> : vector<16x128xf32>
    %2 = tpu.matmul %0, %1, %cst {dimension_numbers = #tpu.dot_dimension_numbers<[1], [0], [0], [1], [0, 0, 1, 1], [], []>} : vector<16x32xf32>, vector<32x128xf32>, vector<16x128xf32> -> vector<16x128xf32>
    %c0_3 = arith.constant 0 : index
    %c0_4 = arith.constant 0 : index
    %3 = vector.load %arg4[%c0_3, %c0_4] : memref<1x128xf32, #tpu.memory_space<vmem>>, vector<1x128xf32>
    %4 = vector.broadcast %3 : vector<1x128xf32> to vector<16x128xf32>
    %5 = arith.addf %2, %4 : vector<16x128xf32>
    %cst_5 = arith.constant 5.000000e-01 : f32
    %6 = vector.broadcast %cst_5 : f32 to vector<16x128xf32>
    %7 = arith.mulf %6, %5 : vector<16x128xf32>
    %cst_6 = arith.constant 0.707106769 : f32
    %8 = vector.broadcast %cst_6 : f32 to vector<16x128xf32>
    %9 = arith.mulf %5, %8 : vector<16x128xf32>
    %10 = math.erf %9 : vector<16x128xf32>
    %cst_7 = arith.constant 1.000000e+00 : f32
    %11 = vector.broadcast %cst_7 : f32 to vector<16x128xf32>
    %12 = arith.addf %11, %10 : vector<16x128xf32>
    %13 = arith.mulf %7, %12 : vector<16x128xf32>
    %c0_8 = arith.constant 0 : index
    %c0_9 = arith.constant 0 : index
    %14 = vector.load %arg5[%c0_8, %c0_9] : memref<128x32xf32, #tpu.memory_space<vmem>>, vector<128x32xf32>
    %cst_10 = arith.constant dense<0.000000e+00> : vector<16x32xf32>
    %15 = tpu.matmul %13, %14, %cst_10 {dimension_numbers = #tpu.dot_dimension_numbers<[1], [0], [0], [1], [0, 0, 1, 1], [], []>} : vector<16x128xf32>, vector<128x32xf32>, vector<16x32xf32> -> vector<16x32xf32>
    %c0_11 = arith.constant 0 : index
    %c0_12 = arith.constant 0 : index
    %16 = vector.load %arg6[%c0_11, %c0_12] : memref<1x32xf32, #tpu.memory_space<vmem>>, vector<1x32xf32>
    %17 = vector.broadcast %16 : vector<1x32xf32> to vector<16x32xf32>
    %18 = arith.addf %15, %17 : vector<16x32xf32>
    %c0_13 = arith.constant 0 : index
    %c0_14 = arith.constant 0 : index
    %19 = vector.load %arg7[%c0_13, %c0_14] : memref<16x32xf32, #tpu.memory_space<vmem>>, vector<16x32xf32>
    tpu.vector_store %arg7[%c0_13, %c0_14], %18 {strides = array<i32>} : memref<16x32xf32, #tpu.memory_space<vmem>>, vector<16x32xf32>,
    return
  }
  func.func @transform_0(%arg0: i32, %arg1: i32) -> (i32, i32) {
    %c0_i32 = arith.constant 0 : i32
    %c0_i32_0 = arith.constant 0 : i32
    return %arg0, %c0_i32 : i32, i32
  }
  func.func @transform_1(%arg0: i32, %arg1: i32) -> (i32, i32) {
    %c0_i32 = arith.constant 0 : i32
    %c0_i32_0 = arith.constant 0 : i32
    return %c0_i32, %arg1 : i32, i32
  }
  func.func @transform_2(%arg0: i32, %arg1: i32) -> (i32, i32) {
    %c0_i32 = arith.constant 0 : i32
    %c0_i32_0 = arith.constant 0 : i32
    return %c0_i32, %arg1 : i32, i32
  }
  func.func @transform_3(%arg0: i32, %arg1: i32) -> (i32, i32) {
    %c0_i32 = arith.constant 0 : i32
    %c0_i32_0 = arith.constant 0 : i32
    return %arg1, %c0_i32 : i32, i32
  }
  func.func @transform_4(%arg0: i32, %arg1: i32) -> (i32, i32) {
    %c0_i32 = arith.constant 0 : i32
    %c0_i32_0 = arith.constant 0 : i32
    %c0_i32_1 = arith.constant 0 : i32
    return %c0_i32, %c0_i32_0 : i32, i32
  }
  func.func @transform_5(%arg0: i32, %arg1: i32) -> (i32, i32) {
    %c0_i32 = arith.constant 0 : i32
    %c0_i32_0 = arith.constant 0 : i32
    return %arg0, %c0_i32 : i32, i32
  }
}

</mosaic_0001>

<llo_original>
// kernel: mlp_pallas.1
$region0: #{mlp_pallas.1}
  #allocation0 [shape = 'u32[]', space=smem, size = 0x4, offset = 0x4, fixed_abs, tag = 'smem constant byte address 0x4 - core index']
  #allocation1 [shape = 'u32[144,128]{1,0:T(1,128)}', space=vmem, size = 0x12000, scoped, tag = 'internal scratch']
  %s0 = inlined_call_operand.vmem [shape: f32[16,32], index: 0, kind: input, shape index: {}]
  %s1 = inlined_call_operand.vmem [shape: f32[32,128], index: 1, kind: input, shape index: {}]
  %s2 = inlined_call_operand.vmem [shape: f32[1,128], index: 2, kind: input, shape index: {}]
  %s3 = inlined_call_operand.vmem [shape: f32[128,32], index: 3, kind: input, shape index: {}]
  %s4 = inlined_call_operand.vmem [shape: f32[1,32], index: 4, kind: input, shape index: {}]
  %s5 = inlined_call_operand.hbm [shape: f32[16,32], index: 5, kind: output, shape index: {}]
  %s6 = sld [smem:[#allocation0]]
  $region30: #{mlp_pallas.1} parent=0
    _
  %s8 = ssub.s32 1, %s6
  %s9 = scalar_select 0, %s8, %s6
  $region1: #{mlp_pallas.1} parent=0
    #allocation2 [shape = 'u8[8192]{0}', space=vmem, size = 0x2000, scoped, tag = 'output window, operand 0, single buffered']
    #allocation3 [shape = 's32[1]{0}', space=sflag, size = 0x4, scoped, tag = 'scoped memory for mlp_pallas.1']
    %10 = vsyncpa [#allocation3], 0
    // Predicated region
    $region2: #{mlp_pallas.1} parent=1 // pred_check
      _
    $region3: #{mlp_pallas.1} parent=1 // pred_check_branch
      %12 = sbr.rel (0) target = $region5
    $region4: #{mlp_pallas.1} parent=1 // pred_region
      _
    $region5: #{mlp_pallas.1} parent=1 // pred_fallthru
      _
    // Predicated region
    $region6: #{mlp_pallas.1} parent=1 // pred_check
      _
    $region7: #{mlp_pallas.1} parent=1 // pred_check_branch
      %14 = sbr.rel (0) target = $region9
    $region8: #{mlp_pallas.1} parent=1 // pred_region
      _
    $region9: #{mlp_pallas.1} parent=1 // pred_fallthru
      _
    // Predicated region
    $region10: #{mlp_pallas.1} parent=1 // pred_check
      _
    $region11: #{mlp_pallas.1} parent=1 // pred_check_branch
      %16 = sbr.rel (0) target = $region13
    $region12: #{mlp_pallas.1} parent=1 // pred_region
      _
    $region13: #{mlp_pallas.1} parent=1 // pred_fallthru
      _
    // Predicated region
    $region14: #{mlp_pallas.1} parent=1 // pred_check
      _
    $region15: #{mlp_pallas.1} parent=1 // pred_check_branch
      %18 = sbr.rel (0) target = $region17
    $region16: #{mlp_pallas.1} parent=1 // pred_region
      _
    $region17: #{mlp_pallas.1} parent=1 // pred_fallthru
      _
    // Predicated region
    $region18: #{mlp_pallas.1} parent=1 // pred_check
      _
    $region19: #{mlp_pallas.1} parent=1 // pred_check_branch
      %20 = sbr.rel (0) target = $region21
    $region20: #{mlp_pallas.1} parent=1 // pred_region
      _
    $region21: #{mlp_pallas.1} parent=1 // pred_fallthru
      _
    %v21 = vld [vmem:[%s0] sm:$0xff]
    %v22 = vld [vmem:[%s0 + $0x8] sm:$0xff]
    %v23 = vld [vmem:[%s1] sm:$0xff]
    %v24 = vld [vmem:[%s1 + $0x8] sm:$0xff]
    %v25 = vld [vmem:[%s1 + $0x10] sm:$0xff]
    %v26 = vld [vmem:[%s1 + $0x18] sm:$0xff]
    %v27 = vld [vmem:[%s2] sm:$0x1]
    %v29 = vlaneseq
    %v30 = vshrl.u32 %v29, 7
    %v31 = vsub.s32 0, %v30
    %v32 = vrot.slane %v27, %v31
    %vm34 = vcmask 261120
    %v36 = vsel %vm34, %v21, 0
    %v39 = vsel %vm34, %v22, 0
    %41 = vmatprep.subr.mxu0 0.0
    %42 = vmatpush1.msra.mxu0 %v23
    %43 = vmatprep.subr.mxu0 0.0
    %44 = vmatpush1.msra.mxu0 %v24
    %45 = vmatprep.subr.mxu0 0.0
    %46 = vmatpush1.msra.mxu0 %v25
    %47 = vmatprep.subr.mxu0 0.0
    %48 = vmatpush1.msra.mxu0 %v26
    %49 = vmatprep.subr.mxu0 0.0
    %50 = vmatpush1.msra.mxu0 0.0
    %51 = vmatprep.subr.mxu0 0.0
    %52 = vmatpush1.msra.mxu0 0.0
    %53 = vmatprep.subr.mxu0 0.0
    %54 = vmatpush1.msra.mxu0 0.0
    %55 = vmatprep.subr.mxu0 0.0
    %56 = vmatpush1.msra.mxu0 0.0
    %57 = vmatprep.subr.mxu0 0.0
    %58 = vmatpush1.msra.mxu0 0.0
    %59 = vmatprep.subr.mxu0 0.0
    %60 = vmatpush1.msra.mxu0 0.0
    %61 = vmatprep.subr.mxu0 0.0
    %62 = vmatpush1.msra.mxu0 0.0
    %63 = vmatprep.subr.mxu0 0.0
    %64 = vmatpush1.msra.mxu0 0.0
    %65 = vmatprep.subr.mxu0 0.0
    %66 = vmatpush1.msra.mxu0 0.0
    %67 = vmatprep.subr.mxu0 0.0
    %68 = vmatpush1.msra.mxu0 0.0
    %69 = vmatprep.subr.mxu0 0.0
    %70 = vmatpush1.msra.mxu0 0.0
    %71 = vmatprep.subr.mxu0 0.0
    %72 = vmatpush1.msra.mxu0 0.0
    %73 = vmatprep.subr.mxu0 0.0
    %74 = vmatpush1.msra.mxu0 0.0
    %75 = vmatprep.subr.mxu0 0.0
    %76 = vmatpush1.msra.mxu0 0.0
    %77 = vmatprep.subr.mxu0 0.0
    %78 = vmatpush1.msra.mxu0 0.0
    %79 = vmatprep.subr.mxu0 0.0
    %80 = vmatpush1.msra.mxu0 0.0
    %81 = vmatprep.subr.mxu0 0.0
    %82 = vmatpush1.msra.mxu0 0.0
    %83 = vmatprep.subr.mxu0 0.0
    %84 = vmatpush1.msra.mxu0 0.0
    %85 = vmatprep.subr.mxu0 0.0
    %86 = vmatpush1.msra.mxu0 0.0
    %87 = vmatprep.subr.mxu0 0.0
    %88 = vmatpush1.msra.mxu0 0.0
    %89 = vmatprep.subr.mxu0 0.0
    %90 = vmatpush1.msra.mxu0 0.0
    %91 = vmatprep.subr.mxu0 0.0
    %92 = vmatpush1.msra.mxu0 0.0
    %93 = vmatprep.subr.mxu0 0.0
    %94 = vmatpush1.msra.mxu0 0.0
    %95 = vmatprep.subr.mxu0 0.0
    %96 = vmatpush1.msra.mxu0 0.0
    %97 = vmatprep.subr.mxu0 0.0
    %98 = vmatpush1.msra.mxu0 0.0
    %99 = vmatprep.subr.mxu0 0.0
    %100 = vmatpush1.msra.mxu0 0.0
    %101 = vmatprep.subr.mxu0 0.0
    %102 = vmatpush1.msra.mxu0 0.0
    %103 = vmatprep.subr.mxu0 0.0
    %104 = vmatpush1.msra.mxu0 0.0
    %105 = vmatprep.mubr.f32.mxu0 0.0
    %106 = vmatmul.mubr.f32.gmra.mrb[0].mxu0 %v36
    %v107 = vpop.f32.mrb[0].mxu0
    %v108 = vadd.f32 %v32, %v107
    %v109 = vpop.f32.mrb[0].mxu0
    %110 = vmatprep.mubr.f32.mxu0 0.0
    %111 = vmatmul.mubr.f32.gmra.mrb[0].mxu0 %v39
    %v112 = vpop.f32.mrb[0].mxu0
    %v113 = vadd.f32 %v32, %v112
    %v114 = vpop.f32.mrb[0].mxu0
    %115 = vdwg.mxu0
    %v116 = vmul.f32 %v108, 0.5
    %v117 = vmul.f32 %v113, 0.5
    %v118 = vmul.f32 %v108, 0.70710677
    %v119 = vmul.f32 %v113, 0.70710677
    %v120 = verf.f32.pop %v118
    %v121 = verf.f32.pop %v119
    %v122 = vadd.f32 %v120, 1.0
    %v123 = vadd.f32 %v121, 1.0
    %v124 = vmul.f32 %v116, %v122
    %v125 = vmul.f32 %v117, %v123
    %v126 = vld [vmem:[%s3] sm:$0xff]
    %v127 = vld [vmem:[%s3 + $0x8] sm:$0xff]
    %v128 = vld [vmem:[%s3 + $0x10] sm:$0xff]
    %v129 = vld [vmem:[%s3 + $0x18] sm:$0xff]
    %v130 = vld [vmem:[%s3 + $0x20] sm:$0xff]
    %v131 = vld [vmem:[%s3 + $0x28] sm:$0xff]
    %v132 = vld [vmem:[%s3 + $0x30] sm:$0xff]
    %v133 = vld [vmem:[%s3 + $0x38] sm:$0xff]
    %v134 = vld [vmem:[%s3 + $0x40] sm:$0xff]
    %v135 = vld [vmem:[%s3 + $0x48] sm:$0xff]
    %v136 = vld [vmem:[%s3 + $0x50] sm:$0xff]
    %v137 = vld [vmem:[%s3 + $0x58] sm:$0xff]
    %v138 = vld [vmem:[%s3 + $0x60] sm:$0xff]
    %v139 = vld [vmem:[%s3 + $0x68] sm:$0xff]
    %v140 = vld [vmem:[%s3 + $0x70] sm:$0xff]
    %v141 = vld [vmem:[%s3 + $0x78] sm:$0xff]
    %v142 = vld [vmem:[%s4] sm:$0x1]
    %v144 = vlaneseq
    %v145 = vshrl.u32 %v144, 7
    %v146 = vsub.s32 0, %v145
    %v147 = vrot.slane %v142, %v146
    %149 = vmatprep.subr.mxu0 0.0
    %150 = vmatpush1.msra.mxu0 %v126
    %151 = vmatprep.subr.mxu0 0.0
    %152 = vmatpush1.msra.mxu0 %v127
    %153 = vmatprep.subr.mxu0 0.0
    %154 = vmatpush1.msra.mxu0 %v128
    %155 = vmatprep.subr.mxu0 0.0
    %156 = vmatpush1.msra.mxu0 %v129
    %157 = vmatprep.subr.mxu0 0.0
    %158 = vmatpush1.msra.mxu0 %v130
    %159 = vmatprep.subr.mxu0 0.0
    %160 = vmatpush1.msra.mxu0 %v131
    %161 = vmatprep.subr.mxu0 0.0
    %162 = vmatpush1.msra.mxu0 %v132
    %163 = vmatprep.subr.mxu0 0.0
    %164 = vmatpush1.msra.mxu0 %v133
    %165 = vmatprep.subr.mxu0 0.0
    %166 = vmatpush1.msra.mxu0 %v134
    %167 = vmatprep.subr.mxu0 0.0
    %168 = vmatpush1.msra.mxu0 %v135
    %169 = vmatprep.subr.mxu0 0.0
    %170 = vmatpush1.msra.mxu0 %v136
    %171 = vmatprep.subr.mxu0 0.0
    %172 = vmatpush1.msra.mxu0 %v137
    %173 = vmatprep.subr.mxu0 0.0
    %174 = vmatpush1.msra.mxu0 %v138
    %175 = vmatprep.subr.mxu0 0.0
    %176 = vmatpush1.msra.mxu0 %v139
    %177 = vmatprep.subr.mxu0 0.0
    %178 = vmatpush1.msra.mxu0 %v140
    %179 = vmatprep.subr.mxu0 0.0
    %180 = vmatpush1.msra.mxu0 %v141
    %181 = vmatprep.subr.mxu0 0.0
    %182 = vmatpush1.msra.mxu0 0.0
    %183 = vmatprep.subr.mxu0 0.0
    %184 = vmatpush1.msra.mxu0 0.0
    %185 = vmatprep.subr.mxu0 0.0
    %186 = vmatpush1.msra.mxu0 0.0
    %187 = vmatprep.subr.mxu0 0.0
    %188 = vmatpush1.msra.mxu0 0.0
    %189 = vmatprep.subr.mxu0 0.0
    %190 = vmatpush1.msra.mxu0 0.0
    %191 = vmatprep.subr.mxu0 0.0
    %192 = vmatpush1.msra.mxu0 0.0
    %193 = vmatprep.subr.mxu0 0.0
    %194 = vmatpush1.msra.mxu0 0.0
    %195 = vmatprep.subr.mxu0 0.0
    %196 = vmatpush1.msra.mxu0 0.0
    %197 = vmatprep.subr.mxu0 0.0
    %198 = vmatpush1.msra.mxu0 0.0
    %199 = vmatprep.subr.mxu0 0.0
    %200 = vmatpush1.msra.mxu0 0.0
    %201 = vmatprep.subr.mxu0 0.0
    %202 = vmatpush1.msra.mxu0 0.0
    %203 = vmatprep.subr.mxu0 0.0
    %204 = vmatpush1.msra.mxu0 0.0
    %205 = vmatprep.subr.mxu0 0.0
    %206 = vmatpush1.msra.mxu0 0.0
    %207 = vmatprep.subr.mxu0 0.0
    %208 = vmatpush1.msra.mxu0 0.0
    %209 = vmatprep.subr.mxu0 0.0
    %210 = vmatpush1.msra.mxu0 0.0
    %211 = vmatprep.subr.mxu0 0.0
    %212 = vmatpush1.msra.mxu0 0.0
    %213 = vmatprep.mubr.f32.mxu0 0.0
    %214 = vmatmul.mubr.f32.gmra.mrb[0].mxu0 %v124
    %v215 = vpop.f32.mrb[0].mxu0
    %v216 = vadd.f32 %v147, %v215
    %v217 = vpop.f32.mrb[0].mxu0
    %218 = vmatprep.mubr.f32.mxu0 0.0
    %219 = vmatmul.mubr.f32.gmra.mrb[0].mxu0 %v125
    %v220 = vpop.f32.mrb[0].mxu0
    %v221 = vadd.f32 %v147, %v220
    %v222 = vpop.f32.mrb[0].mxu0
    %223 = vdwg.mxu0
    %224 = vst.msk [vmem:[#allocation2] sm:$0xff] %vm34, %v216
    %225 = vst.msk [vmem:[#allocation2 + $0x8] sm:$0xff] %vm34, %v221
    // Predicated region
    $region22: #{mlp_pallas.1} parent=1 // pred_check
      _
    $region23: #{mlp_pallas.1} parent=1 // pred_check_branch
      %227 = sbr.rel (0) target = $region25
    $region24: #{mlp_pallas.1} parent=1 // pred_region
      %s229 = ssub.s32 256, 256
      %230 = vsyncadd [#allocation3], %s229
      %s231 = sshll.u32 [#allocation2], 4
      %s232 = int_to_ptr.vmem [resolvable:$true] %s231
      %237 = dma.vmem_to_hbm [thread:$0]  %s232, 256, %s5, [#allocation3], 128, 128, 8
    $region25: #{mlp_pallas.1} parent=1 // pred_fallthru
      _
    // Predicated region
    $region26: #{mlp_pallas.1} parent=1 // pred_check
      _
    $region27: #{mlp_pallas.1} parent=1 // pred_check_branch
      %239 = sbr.rel (0) target = $region29
    $region28: #{mlp_pallas.1} parent=1 // pred_region
      %240 = dma.done [#allocation3], 256
    $region29: #{mlp_pallas.1} parent=1 // pred_fallthru
      _
    %241 = vsyncpa [#allocation3], 1

</llo_original>
